<compile_context>
chip_gen: v7x
topology: tpu7x:2x2x1
jax: 0.10.0
libtpu: 0.0.40
codegen_flags: <defaults>
</compile_context>

<pallas_src>
import functools

import jax
import jax.numpy as jnp
from jax.experimental import pallas as pl
from jax.experimental.pallas import tpu as pltpu

_LANE = 128
_MiB = 1024 * 1024


def _linreg_kernel(w_ref, b_ref, x_ref, o_ref):
    # w_ref / b_ref are (1,)-shaped scalars in SMEM; x_ref / o_ref are VMEM tiles.
    w = w_ref[0]
    b = b_ref[0]
    o_ref[...] = (w * x_ref[...] + b).astype(o_ref.dtype)


@functools.lru_cache(maxsize=1)
def _generation_params():
    """Generation-aware tiling / VMEM budget (v5e / v6e / v7x)."""
    vmem_capacity = 128 * _MiB
    try:
        vmem_capacity = int(pltpu.get_tpu_info().vmem_capacity_bytes)
    except Exception:
        pass
    kind = ""
    try:
        kind = jax.devices()[0].device_kind.lower()
    except Exception:
        pass

    is_v7 = ("v7" in kind) or ("7x" in kind) or vmem_capacity <= 64 * _MiB
    is_v5 = (not is_v7) and ("v5" in kind)

    if is_v7:
        # 3.2 TB/s HBM, 64 MiB VMEM, 2 TCs: big tiles to amortize the ~0.35 us
        # per-grid-step cost, 3-deep input buffering, tight but safe vmem cap,
        # small gridless threshold so mid-size inputs still shard across cores.
        return dict(target_tile_bytes=8 * _MiB,
                    vmem_default_bytes=48 * _MiB,
                    vmem_ceiling_bytes=56 * _MiB,
                    input_buffers=3,
                    single_block_bytes=1 * _MiB)
    if is_v5:
        # 0.82 TB/s HBM: 2 MiB tiles already amortize step cost to <10%; keep
        # the request at the 16 MiB scoped default unless tiles force more.
        return dict(target_tile_bytes=2 * _MiB,
                    vmem_default_bytes=16 * _MiB,
                    vmem_ceiling_bytes=100 * _MiB,
                    input_buffers=2,
                    single_block_bytes=4 * _MiB)
    # v6e (default): measured sweep saturates ~85-86% of roofline near 4 MiB.
    return dict(target_tile_bytes=4 * _MiB,
                vmem_default_bytes=32 * _MiB,
                vmem_ceiling_bytes=100 * _MiB,
                input_buffers=2,
                single_block_bytes=4 * _MiB)


def _sublane_multiple(dtype) -> int:
    # The (8, 128) vreg tile is in 32-bit words; sub-32-bit dtypes pack along
    # sublanes, so the minimum legal second-to-last block dim scales up.
    itemsize = jnp.dtype(dtype).itemsize
    return max(8, 32 // max(1, itemsize))


def _pick_tiles(M, N, itemsize, sub, target_bytes):
    """Pick (tile_m, tile_n) targeting ~target_bytes per tile (byte-capped, not row-capped)."""
    row_bytes = N * itemsize
    if sub * row_bytes <= target_bytes:
        tile_n = N                              # full rows: lane-dense, no N grid axis
    else:
        tile_n = max(_LANE, (target_bytes // (sub * itemsize)) // _LANE * _LANE)
    tile_m = max(sub, (target_bytes // (tile_n * itemsize)) // sub * sub)
    if tile_m >= M:
        tile_m = M                              # full dim is always a legal block dim
    if tile_n >= N:
        tile_n = N
    return tile_m, tile_n


def _x_block_spec(tm, tn, input_buffers):
    if input_buffers > 2:
        try:
            return pl.BlockSpec((tm, tn), lambda i, j: (i, j),
                                pipeline_mode=pl.Buffered(input_buffers))
        except Exception:
            pass  # older jax without pipeline_mode: fall back to default 2-deep
    return pl.BlockSpec((tm, tn), lambda i, j: (i, j))


def _run_2d(x, weights, bias, out_dtype, tile_m, tile_n, single_block_bytes):
    """Run the kernel on a 2-D (preferably lane-dense) array."""
    M, N = x.shape
    params = _generation_params()
    if single_block_bytes is None:
        single_block_bytes = params["single_block_bytes"]

    itemsize = jnp.dtype(x.dtype).itemsize
    sub = _sublane_multiple(x.dtype)
    smem_scalar = pl.BlockSpec(memory_space=pltpu.SMEM)
    out_shape = jax.ShapeDtypeStruct((M, N), out_dtype)

    # --- Small inputs: one full-array VMEM block, no grid / pipelining machinery.
    if (M * N * itemsize <= single_block_bytes
            and tile_m is None and tile_n is None):
        return pl.pallas_call(
            _linreg_kernel,
            out_shape=out_shape,
            in_specs=[smem_scalar, smem_scalar,
                      pl.BlockSpec(memory_space=pltpu.MemorySpace.VMEM)],
            out_specs=pl.BlockSpec(memory_space=pltpu.MemorySpace.VMEM),
        )(weights, bias, x)

    # --- Tiled path: 2-D grid over (M, N).  Ragged final blocks are handled by
    # Pallas block masking, so there is no divisibility requirement on M or N.
    auto_m, auto_n = _pick_tiles(M, N, itemsize, sub, params["target_tile_bytes"])
    tm = tile_m if tile_m is not None else auto_m
    tn = tile_n if tile_n is not None else auto_n

    if tn != N and tn % _LANE != 0:
        raise ValueError(f"tile_n={tn} must equal N={N} or be a multiple of {_LANE}")
    if tm != M and tm % sub != 0:
        raise ValueError(f"tile_m={tm} must equal M={M} or be a multiple of {sub} for dtype {x.dtype}")

    grid = (pl.cdiv(M, tm), pl.cdiv(N, tn))

    # Scoped-VMEM request: N-deep input buffers + 2-deep output buffers + slack,
    # clamped to a generation-safe ceiling (v5e/v6e have 128 MiB physical; v7x 64 MiB).
    in_buffers = params["input_buffers"]
    tile_bytes = tm * tn * itemsize
    needed = (in_buffers + 2) * tile_bytes + 2 * _MiB
    vmem_limit = int(min(params["vmem_ceiling_bytes"],
                         max(params["vmem_default_bytes"], needed)))

    return pl.pallas_call(
        _linreg_kernel,
        out_shape=out_shape,
        grid=grid,
        in_specs=[
            smem_scalar,                          # weights (1,) in SMEM
            smem_scalar,                          # bias    (1,) in SMEM
            _x_block_spec(tm, tn, in_buffers),    # x tile (3-deep buffered on v7x)
        ],
        out_specs=pl.BlockSpec((tm, tn), lambda i, j: (i, j)),
        compiler_params=pltpu.CompilerParams(
            dimension_semantics=("parallel", "parallel"),
            vmem_limit_bytes=vmem_limit),
    )(weights, bias, x)


def linear_regression(x, weights, bias, *, tile_m=None, tile_n=None,
                      single_block_bytes=None):
    """Computes weights * x + bias (scalar broadcast), matching the PyTorch module."""
    x = jnp.asarray(x)
    weights = jnp.asarray(weights)
    bias = jnp.asarray(bias)
    if weights.size != 1 or bias.size != 1:
        raise ValueError("weights and bias must be size-1 (scalar) parameters")
    weights = weights.reshape(1)
    bias = bias.reshape(1)

    # PyTorch-style type promotion for the output dtype.
    out_dtype = jnp.result_type(x.dtype, weights.dtype, bias.dtype)

    # Fast path: already a lane-dense 2-D array.
    if x.ndim == 2 and x.shape[-1] >= _LANE:
        return _run_2d(x, weights, bias, out_dtype, tile_m, tile_n, single_block_bytes)

    # Lane-density fixup: the op is elementwise with scalar broadcast, so we can
    # flatten any shape (incl. last dim < 128) to a lane-dense (rows, L) slab,
    # padding the tail, and reshape back afterwards.  Avoids masked vst.msk stores.
    orig_shape = x.shape
    total = int(x.size)
    if total == 0:
        return jnp.zeros(orig_shape, dtype=out_dtype)
    L = _LANE * 4
    while L > _LANE and total < L:
        L //= 2
    padded = -(-total // L) * L
    flat = x.reshape(-1)
    if padded != total:
        flat = jnp.pad(flat, (0, padded - total))
    x2d = flat.reshape(padded // L, L)
    out2d = _run_2d(x2d, weights, bias, out_dtype, tile_m, tile_n, single_block_bytes)
    return out2d.reshape(-1)[:total].reshape(orig_shape)


if __name__ == "__main__":
    key = jax.random.PRNGKey(0)
    k_x, k_w, k_b, k_x2, k_x3 = jax.random.split(key, 5)

    # Parameters: same shapes as nn.Parameter(torch.randn(1)), deterministic init.
    weights = jax.random.normal(k_w, (1,), dtype=jnp.float32)
    bias = jax.random.normal(k_b, (1,), dtype=jnp.float32)

    # Case 1: small lane-dense input -> single-block (gridless) fast path.
    x_small = jax.random.normal(k_x, (16, 128), dtype=jnp.float32)
    out_small = jax.block_until_ready(linear_regression(x_small, weights, bias))
    ref_small = weights[0] * x_small + bias[0]
    assert out_small.shape == ref_small.shape and out_small.dtype == ref_small.dtype
    assert jnp.allclose(out_small, ref_small, atol=1e-6, rtol=1e-6)

    # Case 2: force the tiled (gridded) path at a small shape, with a ragged
    # final M block (300 % 128 != 0) to exercise pl.cdiv + block masking.
    x_tiled = jax.random.normal(k_x2, (300, 256), dtype=jnp.float32)
    out_tiled = jax.block_until_ready(
        linear_regression(x_tiled, weights, bias,
                          tile_m=128, tile_n=256, single_block_bytes=0))
    ref_tiled = weights[0] * x_tiled + bias[0]
    assert out_tiled.shape == ref_tiled.shape and out_tiled.dtype == ref_tiled.dtype
    assert jnp.allclose(out_tiled, ref_tiled, atol=1e-6, rtol=1e-6)

    # Case 3: narrow last dim (N < 128) -> lane-density reshape + pad path.
    x_narrow = jax.random.normal(k_x3, (50, 7), dtype=jnp.float32)
    out_narrow = jax.block_until_ready(linear_regression(x_narrow, weights, bias))
    ref_narrow = weights[0] * x_narrow + bias[0]
    assert out_narrow.shape == ref_narrow.shape and out_narrow.dtype == ref_narrow.dtype
    assert jnp.allclose(out_narrow, ref_narrow, atol=1e-6, rtol=1e-6)

    print("KERNEL_OK")
</pallas_src>

<mosaic_0001>
module attributes {stable_mosaic.version = 11 : i64} {
  func.func @_linreg_kernel(%arg0: memref<1xf32, #tpu.memory_space<smem>>, %arg1: memref<1xf32, #tpu.memory_space<smem>>, %arg2: memref<16x128xf32, #tpu.memory_space<vmem>>, %arg3: memref<16x128xf32, #tpu.memory_space<vmem>>) attributes {dimension_semantics = [], scalar_prefetch = 0 : i64, scratch_operands = 0 : i64, tpu.core_type = #tpu.core_type<tc>} {
    %c0 = arith.constant 0 : index
    %0 = memref.load %arg0[%c0] : memref<1xf32, #tpu.memory_space<smem>>
    %c0_0 = arith.constant 0 : index
    %1 = memref.load %arg1[%c0_0] : memref<1xf32, #tpu.memory_space<smem>>
    %c0_1 = arith.constant 0 : index
    %c0_2 = arith.constant 0 : index
    %2 = vector.load %arg2[%c0_1, %c0_2] : memref<16x128xf32, #tpu.memory_space<vmem>>, vector<16x128xf32>
    %3 = vector.broadcast %0 : f32 to vector<16x128xf32>
    %4 = arith.mulf %3, %2 : vector<16x128xf32>
    %5 = vector.broadcast %1 : f32 to vector<16x128xf32>
    %6 = arith.addf %4, %5 : vector<16x128xf32>
    %c0_3 = arith.constant 0 : index
    %c0_4 = arith.constant 0 : index
    %7 = vector.load %arg3[%c0_3, %c0_4] : memref<16x128xf32, #tpu.memory_space<vmem>>, vector<16x128xf32>
    tpu.vector_store %arg3[%c0_3, %c0_4], %6 {strides = array<i32>} : memref<16x128xf32, #tpu.memory_space<vmem>>, vector<16x128xf32>,
    return
  }
}

</mosaic_0001>

<llo_original>
// kernel: tpu_custom_call.1
$region0: #{tpu_custom_call.1}
  #allocation0 [shape = 'u32[]', space=smem, size = 0x4, offset = 0x4, fixed_abs, tag = 'smem constant byte address 0x4 - core index']
  #allocation1 [shape = 'u32[144,128]{1,0:T(1,128)}', space=vmem, size = 0x12000, scoped, tag = 'internal scratch']
  #allocation2 [shape = 'f32[1]{0:T(128)S(6)}', space=smem, size = 0x200, scoped, tag = 'scoped memory for tpu_custom_call.1']
  #allocation3 [shape = 'f32[1]{0:T(128)S(6)}', space=smem, size = 0x200, scoped, tag = 'scoped memory for tpu_custom_call.1']
  %s0 = inlined_call_operand.<no memory space> [shape: f32[1], index: 0, kind: input, shape index: {}]
  %s1 = inlined_call_operand.<no memory space> [shape: f32[1], index: 1, kind: input, shape index: {}]
  %s2 = inlined_call_operand.hbm [shape: f32[16,128], index: 2, kind: input, shape index: {}]
  %s3 = inlined_call_operand.hbm [shape: f32[16,128], index: 3, kind: output, shape index: {}]
  %s4 = sld [smem:[#allocation0]]
  $region26: #{tpu_custom_call.1} parent=0
    _
  %s6 = ssub.s32 1, %s4
  %s7 = scalar_select 0, %s6, %s4
  %8 = sst [smem:[#allocation2]] %s0
  %9 = sst [smem:[#allocation3]] %s1
  $region1: #{tpu_custom_call.1} parent=0
    #allocation4 [shape = 'u8[8192]{0}', space=vmem, size = 0x2000, scoped, tag = 'input window, operand 2, single buffered']
    #allocation5 [shape = 's32[1]{0}', space=sflag, size = 0x4, scoped, tag = 'scoped memory for tpu_custom_call.1']
    #allocation6 [shape = 's32[1]{0}', space=sflag, size = 0x4, scoped, tag = 'scoped memory for tpu_custom_call.1']
    #allocation7 [shape = 'u8[8192]{0}', space=vmem, size = 0x2000, scoped, tag = 'output window, operand 0, single buffered']
    %10 = vsyncpa [#allocation5], 0
    %11 = vsyncpa [#allocation6], 0
    // Predicated region
    $region2: #{tpu_custom_call.1} parent=1 // pred_check
      _
    $region3: #{tpu_custom_call.1} parent=1 // pred_check_branch
      %13 = sbr.rel (0) target = $region5
    $region4: #{tpu_custom_call.1} parent=1 // pred_region
      _
    $region5: #{tpu_custom_call.1} parent=1 // pred_fallthru
      _
    // Predicated region
    $region6: #{tpu_custom_call.1} parent=1 // pred_check
      _
    $region7: #{tpu_custom_call.1} parent=1 // pred_check_branch
      %15 = sbr.rel (0) target = $region9
    $region8: #{tpu_custom_call.1} parent=1 // pred_region
      _
    $region9: #{tpu_custom_call.1} parent=1 // pred_fallthru
      _
    // Predicated region
    $region10: #{tpu_custom_call.1} parent=1 // pred_check
      _
    $region11: #{tpu_custom_call.1} parent=1 // pred_check_branch
      %17 = sbr.rel (0) target = $region13
    $region12: #{tpu_custom_call.1} parent=1 // pred_region
      %s19 = ssub.s32 256, 256
      %20 = vsyncadd [#allocation5], %s19
      %s21 = sshll.u32 [#allocation4], 4
      %s22 = int_to_ptr.vmem [resolvable:$true] %s21
      %27 = dma.hbm_to_vmem [thread:$0]  %s2, 256, %s22, [#allocation5], 128, 128, 8
    $region13: #{tpu_custom_call.1} parent=1 // pred_fallthru
      _
    // Predicated region
    $region14: #{tpu_custom_call.1} parent=1 // pred_check
      _
    $region15: #{tpu_custom_call.1} parent=1 // pred_check_branch
      %29 = sbr.rel (0) target = $region17
    $region16: #{tpu_custom_call.1} parent=1 // pred_region
      %30 = dma.done [#allocation5], 256
    $region17: #{tpu_custom_call.1} parent=1 // pred_fallthru
      _
    %s31 = sld [smem:[#allocation2]]
    %s32 = sld [smem:[#allocation3]]
    %v33 = vld [vmem:[#allocation4] sm:$0xff]
    %v34 = vld [vmem:[#allocation4 + $0x8] sm:$0xff]
    %v35 = vstv %s31
    %v36 = vmul.f32 %v35, %v33
    %v37 = vmul.f32 %v35, %v34
    %v38 = vstv %s32
    %v39 = vadd.f32 %v36, %v38
    %v40 = vadd.f32 %v37, %v38
    %41 = vst [vmem:[#allocation7] sm:$0xff] %v39
    %42 = vst [vmem:[#allocation7 + $0x8] sm:$0xff] %v40
    // Predicated region
    $region18: #{tpu_custom_call.1} parent=1 // pred_check
      _
    $region19: #{tpu_custom_call.1} parent=1 // pred_check_branch
      %44 = sbr.rel (0) target = $region21
    $region20: #{tpu_custom_call.1} parent=1 // pred_region
      %s46 = ssub.s32 256, 256
      %47 = vsyncadd [#allocation6], %s46
      %s48 = sshll.u32 [#allocation7], 4
      %s49 = int_to_ptr.vmem [resolvable:$true] %s48
      %54 = dma.vmem_to_hbm [thread:$0]  %s49, 256, %s3, [#allocation6], 128, 128, 8
    $region21: #{tpu_custom_call.1} parent=1 // pred_fallthru
      _
    // Predicated region
    $region22: #{tpu_custom_call.1} parent=1 // pred_check
      _
    $region23: #{tpu_custom_call.1} parent=1 // pred_check_branch
      %56 = sbr.rel (0) target = $region25
    $region24: #{tpu_custom_call.1} parent=1 // pred_region
      %57 = dma.done [#allocation6], 256
    $region25: #{tpu_custom_call.1} parent=1 // pred_fallthru
      _
    %58 = vsyncpa [#allocation5], 1
    %59 = vsyncpa [#allocation6], 1

</llo_original>
